<compile_context>
chip_gen: v6e
topology: v6e:2x2x1
jax: 0.10.0
libtpu: 0.0.40
codegen_flags: <defaults>
</compile_context>

<pallas_src>
import math
from functools import partial

import numpy as np
import jax
import jax.numpy as jnp
from jax.experimental import pallas as pl
from jax.experimental.pallas import tpu as pltpu


# ----------------------------------------------------------------------------
# Host glue: adjacency construction (data-dependent Python loops over dia_len).
# Mirrors GCNLayer1.message_passing_wo_speaker exactly (use_topic=False).
# TODO(synk): new_graph=True branch (pdb on an unimported module) and
#             use_topic=True branch (out-of-range index) are broken/dead in the
#             original module and are not ported.
# ----------------------------------------------------------------------------
def build_adjacency(x_np: np.ndarray, dia_len) -> np.ndarray:
    n = x_np.shape[0]
    adj = np.zeros((n, n), dtype=np.float32) + np.eye(n, dtype=np.float32)

    def cossim(a, b):
        num = float(np.dot(a, b))
        den = math.sqrt(float(np.dot(a, a))) * math.sqrt(float(np.dot(b, b)))
        if den == 0:
            return 0.0
        return num / den

    start = 0
    for i in range(len(dia_len)):
        for j in range(dia_len[i] - 1):
            for pin in range(dia_len[i] - 1 - j):
                xz = start + j
                yz = xz + pin + 1
                f = cossim(x_np[xz], x_np[yz])
                if 1.0 < f < 1.05:
                    f = 1.0
                elif -1.05 < f < -1.0:
                    f = -1.0
                Aij = 1.0 - math.acos(f) / math.pi
                adj[xz, yz] = Aij
                adj[yz, xz] = Aij
        start += dia_len[i]

    # Identity added above -> row sums >= 1, so d^-0.5 is finite.
    d = adj.sum(axis=1)
    D = np.diag(np.power(d, -0.5)).astype(np.float32)
    adj = D @ adj @ D
    return adj.astype(np.float32)


# ----------------------------------------------------------------------------
# Tiling helpers
# ----------------------------------------------------------------------------
def _round_up(x: int, m: int) -> int:
    return ((x + m - 1) // m) * m


def _pick_tile(n_p: int, target: int) -> int:
    """Largest multiple of 128 that divides n_p and is <= target (>= 128)."""
    assert n_p % 128 == 0
    m = n_p // 128
    best = 1
    for d in range(1, m + 1):
        if m % d == 0 and d * 128 <= target:
            best = d
    return best * 128


# ----------------------------------------------------------------------------
# Pallas kernel:  out = adj @ xw + b
# grid = (row tiles, contraction tiles); contraction (k) is the LAST grid axis,
# output block index is constant over k -> output stays resident in VMEM and is
# used directly as the f32 accumulator (seeded with the bias at k == 0).
# ----------------------------------------------------------------------------
def _make_gcn_kernel(tk: int, xw_resident: bool):
    def kernel(adj_ref, xw_ref, b_ref, o_ref):
        k = pl.program_id(1)

        @pl.when(k == 0)
        def _init():
            # Seed the resident output tile with the broadcast bias.
            o_ref[...] = jnp.zeros_like(o_ref) + b_ref[...]

        if xw_resident:
            start = pl.multiple_of(k * tk, 128)
            xw_tile = xw_ref[pl.ds(start, tk), :]
        else:
            xw_tile = xw_ref[...]

        o_ref[...] += jnp.dot(adj_ref[...], xw_tile,
                              preferred_element_type=jnp.float32)

    return kernel


# ----------------------------------------------------------------------------
# Jitted device path: (optional pad) + xw + pallas_call + slice.
# ----------------------------------------------------------------------------
@partial(jax.jit, static_argnames=("tm", "tk", "n_p", "f_out_p",
                                   "use_bf16", "xw_resident", "adj_prepadded"))
def _gcn_pallas_core(adj_in, x, w_t, b, *, tm, tk, n_p, f_out_p,
                     use_bf16, xw_resident, adj_prepadded):
    N, _ = x.shape
    F_out = w_t.shape[1]
    compute_dtype = jnp.bfloat16 if use_bf16 else jnp.float32

    if adj_prepadded:
        adj_p = adj_in.astype(compute_dtype)
    else:
        # Fallback for device-array adj: pad under the same jit as the kernel.
        adj_p = jnp.zeros((n_p, n_p), compute_dtype).at[:N, :N].set(
            adj_in.astype(compute_dtype))

    # Reassociated linear layer: (adj @ x) @ W == adj @ (x @ W).  xw is tiny.
    xw = jnp.dot(x.astype(jnp.float32), w_t.astype(jnp.float32),
                 preferred_element_type=jnp.float32)
    xw_p = jnp.zeros((n_p, f_out_p), compute_dtype).at[:N, :F_out].set(
        xw.astype(compute_dtype))
    b_p = jnp.zeros((1, f_out_p), jnp.float32).at[0, :F_out].set(
        b.reshape(-1).astype(jnp.float32))

    grid = (n_p // tm, n_p // tk)
    item = 2 if use_bf16 else 4

    if xw_resident:
        xw_spec = pl.BlockSpec((n_p, f_out_p), lambda i, k: (0, 0))   # VMEM-resident
        xw_bytes = 2 * n_p * f_out_p * item
    else:
        xw_spec = pl.BlockSpec((tk, f_out_p), lambda i, k: (k, 0))    # streamed over k
        xw_bytes = 2 * tk * f_out_p * item

    # Explicit scoped-VMEM budget derived from the actual working set.
    vmem_bytes = (2 * tm * tk * item          # adj, double buffered (dominant)
                  + xw_bytes                  # xw
                  + 2 * tm * f_out_p * 4      # output, double buffered (f32)
                  + 2 * f_out_p * 4)          # bias
    vmem_limit = int(min(max(int(vmem_bytes * 1.5) + (4 << 20), 24 << 20),
                         64 << 20))

    out_p = pl.pallas_call(
        _make_gcn_kernel(tk, xw_resident),
        out_shape=jax.ShapeDtypeStruct((n_p, f_out_p), jnp.float32),
        grid_spec=pltpu.PrefetchScalarGridSpec(
            num_scalar_prefetch=0,
            grid=grid,
            in_specs=[
                pl.BlockSpec((tm, tk), lambda i, k: (i, k)),       # adj tile (streamed)
                xw_spec,                                           # xw
                pl.BlockSpec((1, f_out_p), lambda i, k: (0, 0)),   # bias (resident)
            ],
            out_specs=pl.BlockSpec((tm, f_out_p), lambda i, k: (i, 0)),
        ),
        compiler_params=pltpu.CompilerParams(
            # Row tiles are independent -> shard across both TCs on v7x;
            # contraction axis is a carried reduction -> arbitrary.
            dimension_semantics=("parallel", "arbitrary"),
            vmem_limit_bytes=vmem_limit,
        ),
    )(adj_p, xw_p, b_p)

    return out_p[:N, :F_out]


@jax.jit
def _gcn_xla_fallback(adj, x, w_t, b):
    # Small-N fast path: a Pallas launch can't win on toy graphs.
    return jnp.dot(adj, jnp.dot(x, w_t)) + b.reshape(1, -1)


def gcn_layer1_forward(adj, x, w_t, b, *, tile: int = 1024,
                       use_bf16: bool = False, use_pallas=None):
    """out = adj @ (x @ w_t) + b  ==  (adj @ x) @ w_t + b.

    adj: [N, N] (NumPy preferred -> padded on host), x: [N, F_in],
    w_t: [F_in, F_out] (nn.Linear weight transposed), b: [F_out].
    """
    N, _ = x.shape
    F_out = w_t.shape[1]

    if use_pallas is None:
        use_pallas = N >= 1024
    if not use_pallas:
        adj_dev = jnp.asarray(adj) if isinstance(adj, np.ndarray) else adj
        return _gcn_xla_fallback(adj_dev, x, w_t, b)

    # Pad N only to a lane-friendly multiple of 128 (NOT to the tile size).
    n_p = _round_up(N, 128)
    f_out_p = _round_up(F_out, 128)

    # Tiles must be 128-multiples dividing n_p; cap the row tile so the
    # "parallel" axis has >= 2 tiles whenever possible (v7x megacore).
    tk = _pick_tile(n_p, max(128, tile))
    tm_target = max(128, min(tile, n_p // 2 if n_p >= 256 else n_p))
    tm = _pick_tile(n_p, tm_target)

    item = 2 if use_bf16 else 4
    xw_resident = (2 * n_p * f_out_p * item) <= (16 << 20)

    if isinstance(adj, np.ndarray):
        # Pad on host: single padded H2D transfer, no extra device HBM pass.
        adj_np = np.asarray(adj, dtype=np.float32)
        adj_in = jnp.asarray(np.pad(adj_np, ((0, n_p - N), (0, n_p - N))))
        adj_prepadded = True
    else:
        adj_in = adj
        adj_prepadded = False

    return _gcn_pallas_core(adj_in, x, w_t, b,
                            tm=tm, tk=tk, n_p=n_p, f_out_p=f_out_p,
                            use_bf16=use_bf16, xw_resident=xw_resident,
                            adj_prepadded=adj_prepadded)


if __name__ == "__main__":
    # ---- Test 1: exact module semantics on small shapes -----------------
    # Two dialogues of length 5 and 3 -> N = 8 utterance nodes.
    dia_len = [5, 3]
    N = sum(dia_len)
    in_feats, out_feats = 32, 16

    key = jax.random.PRNGKey(0)
    k_x, k_w, k_b, k_x2 = jax.random.split(key, 4)

    inputs = jax.random.normal(k_x, (N, in_feats), dtype=jnp.float32)

    # Deterministic nn.Linear-style init (uniform in +/- 1/sqrt(in_feats)).
    bound = 1.0 / math.sqrt(in_feats)
    weight = jax.random.uniform(k_w, (out_feats, in_feats), jnp.float32, -bound, bound)
    bias = jax.random.uniform(k_b, (out_feats,), jnp.float32, -bound, bound)

    # Host glue: normalized cosine-similarity adjacency (stays NumPy -> host pad).
    adj = build_adjacency(np.asarray(inputs), dia_len)
    w_t = weight.T  # [F_in, F_out]

    out = gcn_layer1_forward(adj, inputs, w_t, bias, use_pallas=True)
    out = jax.block_until_ready(out)

    ref = (jnp.asarray(adj) @ inputs) @ w_t + bias[None, :]
    assert out.shape == (N, out_feats)
    np.testing.assert_allclose(np.asarray(out), np.asarray(ref), rtol=1e-4, atol=1e-4)

    # ---- Test 2: exercise multi-row-tile grid + k-accumulation + jnp adj ----
    N2 = 300  # pads to 384; with tile=128 -> grid (3, 3)
    x2 = jax.random.normal(k_x2, (N2, in_feats), dtype=jnp.float32)
    a2 = jax.random.uniform(jax.random.PRNGKey(1), (N2, N2), jnp.float32)
    a2 = 0.5 * (a2 + a2.T)  # symmetric; just checks the tiled matmul path

    out2 = gcn_layer1_forward(a2, x2, w_t, bias, tile=128, use_pallas=True)
    out2 = jax.block_until_ready(out2)
    ref2 = (a2 @ x2) @ w_t + bias[None, :]
    np.testing.assert_allclose(np.asarray(out2), np.asarray(ref2), rtol=1e-4, atol=1e-4)

    print("KERNEL_OK")
</pallas_src>

<mosaic_0001>
module attributes {stable_mosaic.version = 11 : i64} {
  func.func @kernel(%arg0: i32, %arg1: i32, %arg2: memref<128x128xf32, #tpu.memory_space<vmem>>, %arg3: memref<128x128xf32, #tpu.memory_space<vmem>>, %arg4: memref<1x128xf32, #tpu.memory_space<vmem>>, %arg5: memref<128x128xf32, #tpu.memory_space<vmem>>) attributes {dimension_semantics = [#tpu.dimension_semantics<parallel>, #tpu.dimension_semantics<arbitrary>], iteration_bounds = array<i64: 1, 1>, scalar_prefetch = 0 : i64, scratch_operands = 0 : i64, tpu.core_type = #tpu.core_type<tc>, window_params = [{transform_indices = @transform_0, window_bounds = array<i64: 128, 128>}, {pipeline_mode = #tpu.pipeline_mode<synchronous>, transform_indices = @transform_1, window_bounds = array<i64: 128, 128>}, {pipeline_mode = #tpu.pipeline_mode<synchronous>, transform_indices = @transform_2, window_bounds = array<i64: 1, 128>}, {transform_indices = @transform_3, window_bounds = array<i64: 128, 128>}]} {
    %c0_i32 = arith.constant 0 : i32
    %0 = arith.cmpi eq, %arg1, %c0_i32 : i32
    %1 = arith.extui %0 : i1 to i32
    %c0_i32_0 = arith.constant 0 : i32
    %2 = arith.cmpi ne, %1, %c0_i32_0 : i32
    scf.if %2 {
      %cst_7 = arith.constant 0.000000e+00 : f32
      %12 = vector.broadcast %cst_7 : f32 to vector<128x128xf32>
      %c0_8 = arith.constant 0 : index
      %c0_9 = arith.constant 0 : index
      %13 = vector.load %arg4[%c0_8, %c0_9] : memref<1x128xf32, #tpu.memory_space<vmem>>, vector<1x128xf32>
      %14 = vector.broadcast %13 : vector<1x128xf32> to vector<128x128xf32>
      %15 = arith.addf %12, %14 : vector<128x128xf32>
      %c0_10 = arith.constant 0 : index
      %c0_11 = arith.constant 0 : index
      %16 = vector.load %arg5[%c0_10, %c0_11] : memref<128x128xf32, #tpu.memory_space<vmem>>, vector<128x128xf32>
      tpu.vector_store %arg5[%c0_10, %c0_11], %15 {strides = array<i32>} : memref<128x128xf32, #tpu.memory_space<vmem>>, vector<128x128xf32>,
    } else {
    }
    %c128_i32 = arith.constant 128 : i32
    %3 = arith.muli %arg1, %c128_i32 : i32
    %4 = tpu.assume_multiple %3, 128 : i32
    %5 = arith.index_cast %4 : i32 to index
    %c0 = arith.constant 0 : index
    %6 = vector.load %arg3[%5, %c0] : memref<128x128xf32, #tpu.memory_space<vmem>>, vector<128x128xf32>
    %c0_1 = arith.constant 0 : index
    %c0_2 = arith.constant 0 : index
    %7 = vector.load %arg5[%c0_1, %c0_2] : memref<128x128xf32, #tpu.memory_space<vmem>>, vector<128x128xf32>
    %c0_3 = arith.constant 0 : index
    %c0_4 = arith.constant 0 : index
    %8 = vector.load %arg2[%c0_3, %c0_4] : memref<128x128xf32, #tpu.memory_space<vmem>>, vector<128x128xf32>
    %cst = arith.constant dense<0.000000e+00> : vector<128x128xf32>
    %9 = tpu.matmul %8, %6, %cst {dimension_numbers = #tpu.dot_dimension_numbers<[1], [0], [0], [1], [0, 0, 1, 1], [], []>} : vector<128x128xf32>, vector<128x128xf32>, vector<128x128xf32> -> vector<128x128xf32>
    %10 = arith.addf %7, %9 : vector<128x128xf32>
    %c0_5 = arith.constant 0 : index
    %c0_6 = arith.constant 0 : index
    %11 = vector.load %arg5[%c0_5, %c0_6] : memref<128x128xf32, #tpu.memory_space<vmem>>, vector<128x128xf32>
    tpu.vector_store %arg5[%c0_5, %c0_6], %10 {strides = array<i32>} : memref<128x128xf32, #tpu.memory_space<vmem>>, vector<128x128xf32>,
    return
  }
  func.func @transform_0(%arg0: i32, %arg1: i32) -> (i32, i32) {
    %c0_i32 = arith.constant 0 : i32
    return %arg0, %arg1 : i32, i32
  }
  func.func @transform_1(%arg0: i32, %arg1: i32) -> (i32, i32) {
    %c0_i32 = arith.constant 0 : i32
    %c0_i32_0 = arith.constant 0 : i32
    %c0_i32_1 = arith.constant 0 : i32
    return %c0_i32, %c0_i32_0 : i32, i32
  }
  func.func @transform_2(%arg0: i32, %arg1: i32) -> (i32, i32) {
    %c0_i32 = arith.constant 0 : i32
    %c0_i32_0 = arith.constant 0 : i32
    %c0_i32_1 = arith.constant 0 : i32
    return %c0_i32, %c0_i32_0 : i32, i32
  }
  func.func @transform_3(%arg0: i32, %arg1: i32) -> (i32, i32) {
    %c0_i32 = arith.constant 0 : i32
    %c0_i32_0 = arith.constant 0 : i32
    return %arg0, %c0_i32 : i32, i32
  }
}

</mosaic_0001>

<llo_original>
// kernel: _gcn_pallas_core.1
$region0: #{_gcn_pallas_core.1}
  #allocation0 [shape = 'u32[]', space=smem, size = 0x4, offset = 0x4, fixed_abs, tag = 'smem constant byte address 0x4 - core index']
  #allocation1 [shape = 'u32[144,128]{1,0:T(1,128)}', space=vmem, size = 0x12000, scoped, tag = 'internal scratch']
  %s0 = inlined_call_operand.vmem [shape: f32[128,128], index: 0, kind: input, shape index: {}]
  %s1 = inlined_call_operand.vmem [shape: f32[128,128], index: 1, kind: input, shape index: {}]
  %s2 = inlined_call_operand.vmem [shape: f32[1,128], index: 2, kind: input, shape index: {}]
  %s3 = inlined_call_operand.vmem [shape: f32[128,128], index: 3, kind: output, shape index: {}]
  %s4 = sld [smem:[#allocation0]]
  $region26: #{_gcn_pallas_core.1} parent=0
    _
  %s6 = ssub.s32 1, %s4
  %s7 = scalar_select 0, %s6, %s4
  // Predicated region
  $region2: #{_gcn_pallas_core.1} parent=0 // pred_check
    _
  $region3: #{_gcn_pallas_core.1} parent=0 // pred_check_branch
    %9 = sbr.rel (0) target = $region5
  $region4: #{_gcn_pallas_core.1} parent=0 // pred_region
    _
  $region5: #{_gcn_pallas_core.1} parent=0 // pred_fallthru
    _
  // Predicated region
  $region6: #{_gcn_pallas_core.1} parent=0 // pred_check
    _
  $region7: #{_gcn_pallas_core.1} parent=0 // pred_check_branch
    %11 = sbr.rel (0) target = $region9
  $region8: #{_gcn_pallas_core.1} parent=0 // pred_region
    _
  $region9: #{_gcn_pallas_core.1} parent=0 // pred_fallthru
    _
  // Predicated region
  $region10: #{_gcn_pallas_core.1} parent=0 // pred_check
    _
  $region11: #{_gcn_pallas_core.1} parent=0 // pred_check_branch
    %13 = sbr.rel (0) target = $region13
  $region12: #{_gcn_pallas_core.1} parent=0 // pred_region
    _
  $region13: #{_gcn_pallas_core.1} parent=0 // pred_fallthru
    _
  %p14 = scmp.eq.s32.totalorder 0, 0
  // Predicated region
  $region14: #{_gcn_pallas_core.1} parent=0 // pred_check
    %p15 = pneg %p14
  $region15: #{_gcn_pallas_core.1} parent=0 // pred_check_branch
    %17 = sbr.rel (%p15) target = $region17
  $region16: #{_gcn_pallas_core.1} parent=0 // pred_region
    %v18 = vld [vmem:[%s2] sm:$0x1]
    %v20 = vlaneseq
    %v21 = vshrl.u32 %v20, 7
    %v22 = vsub.s32 0, %v21
    %v23 = vrot.slane %v18, %v22
    %v25 = vadd.f32 %v23, 0.0
    %26 = vst [vmem:[%s3] sm:$0xff] %v25
    %27 = vst [vmem:[%s3 + $0x8] sm:$0xff] %v25
    %28 = vst [vmem:[%s3 + $0x10] sm:$0xff] %v25
    %29 = vst [vmem:[%s3 + $0x18] sm:$0xff] %v25
    %30 = vst [vmem:[%s3 + $0x20] sm:$0xff] %v25
    %31 = vst [vmem:[%s3 + $0x28] sm:$0xff] %v25
    %32 = vst [vmem:[%s3 + $0x30] sm:$0xff] %v25
    %33 = vst [vmem:[%s3 + $0x38] sm:$0xff] %v25
    %34 = vst [vmem:[%s3 + $0x40] sm:$0xff] %v25
    %35 = vst [vmem:[%s3 + $0x48] sm:$0xff] %v25
    %36 = vst [vmem:[%s3 + $0x50] sm:$0xff] %v25
    %37 = vst [vmem:[%s3 + $0x58] sm:$0xff] %v25
    %38 = vst [vmem:[%s3 + $0x60] sm:$0xff] %v25
    %39 = vst [vmem:[%s3 + $0x68] sm:$0xff] %v25
    %40 = vst [vmem:[%s3 + $0x70] sm:$0xff] %v25
    %41 = vst [vmem:[%s3 + $0x78] sm:$0xff] %v25
  $region17: #{_gcn_pallas_core.1} parent=0 // pred_fallthru
    _
  %s42 = smul.u32 0, 128
  %s43 = scalar_lea.vmem %s1, %s42
  %v44 = vld [vmem:[%s43] sm:$0xff]
  %v45 = vld [vmem:[%s43 + $0x8] sm:$0xff]
  %v46 = vld [vmem:[%s43 + $0x10] sm:$0xff]
  %v47 = vld [vmem:[%s43 + $0x18] sm:$0xff]
  %v48 = vld [vmem:[%s43 + $0x20] sm:$0xff]
  %v49 = vld [vmem:[%s43 + $0x28] sm:$0xff]
  %v50 = vld [vmem:[%s43 + $0x30] sm:$0xff]
  %v51 = vld [vmem:[%s43 + $0x38] sm:$0xff]
  %v52 = vld [vmem:[%s43 + $0x40] sm:$0xff]
  %v53 = vld [vmem:[%s43 + $0x48] sm:$0xff]
  %v54 = vld [vmem:[%s43 + $0x50] sm:$0xff]
  %v55 = vld [vmem:[%s43 + $0x58] sm:$0xff]
  %v56 = vld [vmem:[%s43 + $0x60] sm:$0xff]
  %v57 = vld [vmem:[%s43 + $0x68] sm:$0xff]
  %v58 = vld [vmem:[%s43 + $0x70] sm:$0xff]
  %v59 = vld [vmem:[%s43 + $0x78] sm:$0xff]
  %v60 = vld [vmem:[%s3] sm:$0xff]
  %v61 = vld [vmem:[%s3 + $0x8] sm:$0xff]
  %v62 = vld [vmem:[%s3 + $0x10] sm:$0xff]
  %v63 = vld [vmem:[%s3 + $0x18] sm:$0xff]
  %v64 = vld [vmem:[%s3 + $0x20] sm:$0xff]
  %v65 = vld [vmem:[%s3 + $0x28] sm:$0xff]
  %v66 = vld [vmem:[%s3 + $0x30] sm:$0xff]
  %v67 = vld [vmem:[%s3 + $0x38] sm:$0xff]
  %v68 = vld [vmem:[%s3 + $0x40] sm:$0xff]
  %v69 = vld [vmem:[%s3 + $0x48] sm:$0xff]
  %v70 = vld [vmem:[%s3 + $0x50] sm:$0xff]
  %v71 = vld [vmem:[%s3 + $0x58] sm:$0xff]
  %v72 = vld [vmem:[%s3 + $0x60] sm:$0xff]
  %v73 = vld [vmem:[%s3 + $0x68] sm:$0xff]
  %v74 = vld [vmem:[%s3 + $0x70] sm:$0xff]
  %v75 = vld [vmem:[%s3 + $0x78] sm:$0xff]
  %v76 = vld [vmem:[%s0] sm:$0xff]
  %v77 = vld [vmem:[%s0 + $0x8] sm:$0xff]
  %v78 = vld [vmem:[%s0 + $0x10] sm:$0xff]
  %v79 = vld [vmem:[%s0 + $0x18] sm:$0xff]
  %v80 = vld [vmem:[%s0 + $0x20] sm:$0xff]
  %v81 = vld [vmem:[%s0 + $0x28] sm:$0xff]
  %v82 = vld [vmem:[%s0 + $0x30] sm:$0xff]
  %v83 = vld [vmem:[%s0 + $0x38] sm:$0xff]
  %v84 = vld [vmem:[%s0 + $0x40] sm:$0xff]
  %v85 = vld [vmem:[%s0 + $0x48] sm:$0xff]
  %v86 = vld [vmem:[%s0 + $0x50] sm:$0xff]
  %v87 = vld [vmem:[%s0 + $0x58] sm:$0xff]
  %v88 = vld [vmem:[%s0 + $0x60] sm:$0xff]
  %v89 = vld [vmem:[%s0 + $0x68] sm:$0xff]
  %v90 = vld [vmem:[%s0 + $0x70] sm:$0xff]
  %v91 = vld [vmem:[%s0 + $0x78] sm:$0xff]
  %92 = vmatprep.subr.mxu0 0.0
  %93 = vmatpush1.msra.mxu0 %v59
  %94 = vmatprep.subr.mxu0 0.0
  %95 = vmatpush1.msra.mxu0 %v58
  %96 = vmatprep.subr.mxu0 0.0
  %97 = vmatpush1.msra.mxu0 %v57
  %98 = vmatprep.subr.mxu0 0.0
  %99 = vmatpush1.msra.mxu0 %v56
  %100 = vmatprep.subr.mxu0 0.0
  %101 = vmatpush1.msra.mxu0 %v55
  %102 = vmatprep.subr.mxu0 0.0
  %103 = vmatpush1.msra.mxu0 %v54
  %104 = vmatprep.subr.mxu0 0.0
  %105 = vmatpush1.msra.mxu0 %v53
  %106 = vmatprep.subr.mxu0 0.0
  %107 = vmatpush1.msra.mxu0 %v52
  %108 = vmatprep.subr.mxu0 0.0
  %109 = vmatpush1.msra.mxu0 %v51
  %110 = vmatprep.subr.mxu0 0.0
  %111 = vmatpush1.msra.mxu0 %v50
  %112 = vmatprep.subr.mxu0 0.0
  %113 = vmatpush1.msra.mxu0 %v49
  %114 = vmatprep.subr.mxu0 0.0
  %115 = vmatpush1.msra.mxu0 %v48
  %116 = vmatprep.subr.mxu0 0.0
  %117 = vmatpush1.msra.mxu0 %v47
  %118 = vmatprep.subr.mxu0 0.0
  %119 = vmatpush1.msra.mxu0 %v46
  %120 = vmatprep.subr.mxu0 0.0
  %121 = vmatpush1.msra.mxu0 %v45
  %122 = vmatprep.subr.mxu0 0.0
  %123 = vmatpush1.msra.mxu0 %v44
  %124 = vmatprep.subr.mxu0 0.0
  %125 = vmatpush2.msra.mxu0 0.0
  %126 = vmatprep.subr.mxu0 0.0
  %127 = vmatpush2.msra.mxu0 0.0
  %128 = vmatprep.subr.mxu0 0.0
  %129 = vmatpush2.msra.mxu0 0.0
  %130 = vmatprep.subr.mxu0 0.0
  %131 = vmatpush2.msra.mxu0 0.0
  %132 = vmatprep.subr.mxu0 0.0
  %133 = vmatpush2.msra.mxu0 0.0
  %134 = vmatprep.subr.mxu0 0.0
  %135 = vmatpush2.msra.mxu0 0.0
  %136 = vmatprep.subr.mxu0 0.0
  %137 = vmatpush2.msra.mxu0 0.0
  %138 = vmatprep.subr.mxu0 0.0
  %139 = vmatpush2.msra.mxu0 0.0
  %140 = vmatprep.subr.mxu0 0.0
  %141 = vmatpush2.msra.mxu0 0.0
  %142 = vmatprep.subr.mxu0 0.0
  %143 = vmatpush2.msra.mxu0 0.0
  %144 = vmatprep.subr.mxu0 0.0
  %145 = vmatpush2.msra.mxu0 0.0
  %146 = vmatprep.subr.mxu0 0.0
  %147 = vmatpush2.msra.mxu0 0.0
  %148 = vmatprep.subr.mxu0 0.0
  %149 = vmatpush2.msra.mxu0 0.0
  %150 = vmatprep.subr.mxu0 0.0
  %151 = vmatpush2.msra.mxu0 0.0
  %152 = vmatprep.subr.mxu0 0.0
  %153 = vmatpush2.msra.mxu0 0.0
  %154 = vmatprep.subr.mxu0 0.0
  %155 = vmatpush2.msra.mxu0 0.0
  %156 = vmatprep.mubr.f32.mxu0 0.0
  %157 = vmatmul.mubr.f32.gmra.mxu0 %v76
  %v158 = vpop.f32.mrf.mxu0
  %v159 = vadd.f32 0.0, %v158
  %v160 = vpop.f32.mrf.mxu0
  %161 = vmatprep.mubr.f32.mxu0 0.0
  %162 = vmatmul.mubr.f32.gmra.mxu0 %v77
  %v163 = vpop.f32.mrf.mxu0
  %v164 = vadd.f32 0.0, %v163
  %v165 = vpop.f32.mrf.mxu0
  %166 = vmatprep.mubr.f32.mxu0 0.0
  %167 = vmatmul.mubr.f32.gmra.mxu0 %v78
  %v168 = vpop.f32.mrf.mxu0
  %v169 = vadd.f32 0.0, %v168
  %v170 = vpop.f32.mrf.mxu0
  %171 = vmatprep.mubr.f32.mxu0 0.0
  %172 = vmatmul.mubr.f32.gmra.mxu0 %v79
  %v173 = vpop.f32.mrf.mxu0
  %v174 = vadd.f32 0.0, %v173
  %v175 = vpop.f32.mrf.mxu0
  %176 = vmatprep.mubr.f32.mxu0 0.0
  %177 = vmatmul.mubr.f32.gmra.mxu0 %v80
  %v178 = vpop.f32.mrf.mxu0
  %v179 = vadd.f32 0.0, %v178
  %v180 = vpop.f32.mrf.mxu0
  %181 = vmatprep.mubr.f32.mxu0 0.0
  %182 = vmatmul.mubr.f32.gmra.mxu0 %v81
  %v183 = vpop.f32.mrf.mxu0
  %v184 = vadd.f32 0.0, %v183
  %v185 = vpop.f32.mrf.mxu0
  %186 = vmatprep.mubr.f32.mxu0 0.0
  %187 = vmatmul.mubr.f32.gmra.mxu0 %v82
  %v188 = vpop.f32.mrf.mxu0
  %v189 = vadd.f32 0.0, %v188
  %v190 = vpop.f32.mrf.mxu0
  %191 = vmatprep.mubr.f32.mxu0 0.0
  %192 = vmatmul.mubr.f32.gmra.mxu0 %v83
  %v193 = vpop.f32.mrf.mxu0
  %v194 = vadd.f32 0.0, %v193
  %v195 = vpop.f32.mrf.mxu0
  %196 = vmatprep.mubr.f32.mxu0 0.0
  %197 = vmatmul.mubr.f32.gmra.mxu0 %v84
  %v198 = vpop.f32.mrf.mxu0
  %v199 = vadd.f32 0.0, %v198
  %v200 = vpop.f32.mrf.mxu0
  %201 = vmatprep.mubr.f32.mxu0 0.0
  %202 = vmatmul.mubr.f32.gmra.mxu0 %v85
  %v203 = vpop.f32.mrf.mxu0
  %v204 = vadd.f32 0.0, %v203
  %v205 = vpop.f32.mrf.mxu0
  %206 = vmatprep.mubr.f32.mxu0 0.0
  %207 = vmatmul.mubr.f32.gmra.mxu0 %v86
  %v208 = vpop.f32.mrf.mxu0
  %v209 = vadd.f32 0.0, %v208
  %v210 = vpop.f32.mrf.mxu0
  %211 = vmatprep.mubr.f32.mxu0 0.0
  %212 = vmatmul.mubr.f32.gmra.mxu0 %v87
  %v213 = vpop.f32.mrf.mxu0
  %v214 = vadd.f32 0.0, %v213
  %v215 = vpop.f32.mrf.mxu0
  %216 = vmatprep.mubr.f32.mxu0 0.0
  %217 = vmatmul.mubr.f32.gmra.mxu0 %v88
  %v218 = vpop.f32.mrf.mxu0
  %v219 = vadd.f32 0.0, %v218
  %v220 = vpop.f32.mrf.mxu0
  %221 = vmatprep.mubr.f32.mxu0 0.0
  %222 = vmatmul.mubr.f32.gmra.mxu0 %v89
  %v223 = vpop.f32.mrf.mxu0
  %v224 = vadd.f32 0.0, %v223
  %v225 = vpop.f32.mrf.mxu0
  %226 = vmatprep.mubr.f32.mxu0 0.0
  %227 = vmatmul.mubr.f32.gmra.mxu0 %v90
  %v228 = vpop.f32.mrf.mxu0
  %v229 = vadd.f32 0.0, %v228
  %v230 = vpop.f32.mrf.mxu0
  %231 = vmatprep.mubr.f32.mxu0 0.0
  %232 = vmatmul.mubr.f32.gmra.mxu0 %v91
  %v233 = vpop.f32.mrf.mxu0
  %v234 = vadd.f32 0.0, %v233
  %v235 = vpop.f32.mrf.mxu0
  %236 = vdwg.mxu0
  %v237 = vadd.f32 %v60, %v159
  %v238 = vadd.f32 %v61, %v164
  %v239 = vadd.f32 %v62, %v169
  %v240 = vadd.f32 %v63, %v174
  %v241 = vadd.f32 %v64, %v179
  %v242 = vadd.f32 %v65, %v184
  %v243 = vadd.f32 %v66, %v189
  %v244 = vadd.f32 %v67, %v194
  %v245 = vadd.f32 %v68, %v199
  %v246 = vadd.f32 %v69, %v204
  %v247 = vadd.f32 %v70, %v209
  %v248 = vadd.f32 %v71, %v214
  %v249 = vadd.f32 %v72, %v219
  %v250 = vadd.f32 %v73, %v224
  %v251 = vadd.f32 %v74, %v229
  %v252 = vadd.f32 %v75, %v234
  %253 = vst [vmem:[%s3] sm:$0xff] %v237
  %254 = vst [vmem:[%s3 + $0x8] sm:$0xff] %v238
  %255 = vst [vmem:[%s3 + $0x10] sm:$0xff] %v239
  %256 = vst [vmem:[%s3 + $0x18] sm:$0xff] %v240
  %257 = vst [vmem:[%s3 + $0x20] sm:$0xff] %v241
  %258 = vst [vmem:[%s3 + $0x28] sm:$0xff] %v242
  %259 = vst [vmem:[%s3 + $0x30] sm:$0xff] %v243
  %260 = vst [vmem:[%s3 + $0x38] sm:$0xff] %v244
  %261 = vst [vmem:[%s3 + $0x40] sm:$0xff] %v245
  %262 = vst [vmem:[%s3 + $0x48] sm:$0xff] %v246
  %263 = vst [vmem:[%s3 + $0x50] sm:$0xff] %v247
  %264 = vst [vmem:[%s3 + $0x58] sm:$0xff] %v248
  %265 = vst [vmem:[%s3 + $0x60] sm:$0xff] %v249
  %266 = vst [vmem:[%s3 + $0x68] sm:$0xff] %v250
  %267 = vst [vmem:[%s3 + $0x70] sm:$0xff] %v251
  %268 = vst [vmem:[%s3 + $0x78] sm:$0xff] %v252
  // Predicated region
  $region18: #{_gcn_pallas_core.1} parent=0 // pred_check
    _
  $region19: #{_gcn_pallas_core.1} parent=0 // pred_check_branch
    %270 = sbr.rel (0) target = $region21
  $region20: #{_gcn_pallas_core.1} parent=0 // pred_region
    _
  $region21: #{_gcn_pallas_core.1} parent=0 // pred_fallthru
    _
  // Predicated region
  $region22: #{_gcn_pallas_core.1} parent=0 // pred_check
    _
  $region23: #{_gcn_pallas_core.1} parent=0 // pred_check_branch
    %272 = sbr.rel (0) target = $region25
  $region24: #{_gcn_pallas_core.1} parent=0 // pred_region
    _
  $region25: #{_gcn_pallas_core.1} parent=0 // pred_fallthru
    _

</llo_original>
